<compile_context>
chip_gen: v6e
topology: v6e:2x2x1
jax: 0.10.0
libtpu: 0.0.40
codegen_flags: <defaults>
</compile_context>

<pallas_src>
import math

import jax
import jax.numpy as jnp
from jax.experimental import pallas as pl
from jax.experimental.pallas import tpu as pltpu


def _self_fusion_kernel(ids_ref, x_ref, tbl_ref, scale_ref, bias_ref, o_ref):
    """Per-(batch, feature-tile): masked DFT -> freq filter -> masked IDFT."""
    del ids_ref  # only consumed by the twiddle-table index_map

    tbl = tbl_ref[...]                                   # (2S, S) bf16 = [cos ; -sin]
    xb = x_ref[...].astype(jnp.bfloat16)                 # (S, Dt)  bf16 MXU operand

    # Forward masked DFT, Re and Im in one MXU call:
    #   xw[:S] = Re(X) = C @ x ,  xw[S:] = Im(X) = -Sin @ x
    xw = jnp.dot(tbl, xb, preferred_element_type=jnp.float32)      # (2S, Dt) f32
    s = xw.shape[0] // 2

    scale = scale_ref[...]                               # (1, Dt) f32 : (1 + W) / len
    bias = bias_ref[...]                                 # (1, Dt) f32 : b / len
    # Frequency-domain filter.  modReLU (|z|*exp(i*angle(z)) where |z|>0 else 0)
    # is the identity map, so no extra work is needed.
    fr = (xw[:s] * scale + bias).astype(jnp.bfloat16)    # Re(F)/len
    fi = (xw[s:] * scale).astype(jnp.bfloat16)           # Im(F)/len

    # Inverse masked DFT, real part.  cos/sin tables are symmetric, so the same
    # stacked table halves are reused:  y = C @ Re(F)/len - Sin @ Im(F)/len.
    # Masked rows/cols zero out frequencies >= len and output rows >= len.
    y = (jnp.dot(tbl[:s], fr, preferred_element_type=jnp.float32)
         + jnp.dot(tbl[s:], fi, preferred_element_type=jnp.float32))
    o_ref[...] = y.astype(o_ref.dtype)


def _mlp(v, w1, b1, w2, b2):
    hp = jax.lax.Precision.HIGHEST
    h = jax.nn.gelu(jnp.dot(v, w1, precision=hp) + b1, approximate=False)
    return jnp.dot(h, w2, precision=hp) + b2


def _vmem_limit_bytes():
    # Generation-gated scoped-VMEM limit: ~3/4 of physical VMEM
    # (v5e/v6e: 128 MiB -> 96 MiB, v7x: 64 MiB -> 48 MiB).
    try:
        cap = int(pltpu.get_tpu_info().vmem_capacity_bytes)
    except Exception:  # conservative fallback that fits every generation
        cap = 64 * 1024 * 1024
    return max(32 * 1024 * 1024, min(cap * 3 // 4, 100 * 1024 * 1024))


def _build_twiddle_tables(uniq_lens, seq_len):
    """Stacked [cos; -sin] masked-DFT twiddle tables, one per unique length, bf16."""
    # TODO(synk): kn overflows int32 for seq_len >= 46341; use wider ints or
    # generate the tables in-kernel if sequences can be that long.
    idx = jnp.arange(seq_len, dtype=jnp.int32)
    kn = idx[:, None] * idx[None, :]                                   # (S, S)
    l = jnp.maximum(uniq_lens, 1).astype(jnp.int32)[:, None, None]     # (U, 1, 1)
    lf = l.astype(jnp.float32)
    ang = (2.0 * math.pi) * (kn[None] % l).astype(jnp.float32) / lf
    valid = (idx[None, :, None] < l) & (idx[None, None, :] < l)        # (U, S, S)
    cosm = jnp.where(valid, jnp.cos(ang), 0.0)
    sinm = jnp.where(valid, jnp.sin(ang), 0.0)
    return jnp.concatenate([cosm, -sinm], axis=1).astype(jnp.bfloat16)  # (U, 2S, S)


def self_fusion(x, len_x, params):
    """Pallas implementation of Self_Fusion.forward (dropout p=0 -> identity)."""
    ww1, bw1, ww2, bw2, wb1, bb1, wb2, bb2 = params
    B, S, D = x.shape
    lens = jnp.maximum(len_x.astype(jnp.int32), 1)     # clamp: avoid 1/0 -> inf

    # ---- hoisted context + gating MLPs (batched XLA matmuls, exact erf-GELU) ----
    # The extra HBM read of x here is B*S*D, negligible vs. the S^2 table traffic.
    lens_f = lens.astype(jnp.float32)
    c = jnp.sum(x.astype(jnp.float32), axis=1) / lens_f[:, None]          # (B, D)
    scale = 1.0 + _mlp(c, ww1, bw1, ww2, bw2)                             # 1 + W
    bias = _mlp(c, wb1, bb1, wb2, bb2)                                    # b
    # Fold the 1/len IFFT normalisation into the filter: the kernel never divides.
    scale_n = (scale / lens_f[:, None]).reshape(B, 1, D).astype(jnp.float32)
    bias_n = (bias / lens_f[:, None]).reshape(B, 1, D).astype(jnp.float32)

    # ---- deduplicated bf16 twiddle tables (one per unique sequence length) ----
    uniq_lens, table_ids = jnp.unique(lens, size=B, fill_value=1,
                                      return_inverse=True)
    tables = _build_twiddle_tables(uniq_lens, S)                          # (U, 2S, S)
    table_ids = table_ids.reshape(B).astype(jnp.int32)
    # TODO(synk): for S ~> 2K on v7x (64 MiB VMEM) generate the tables in-kernel
    # (broadcasted_iota + integer mod + EUP cos/sin) or tile the frequency axis
    # over an "arbitrary" grid axis with an (S, Dt) accumulator scratch.

    # ---- lane-aligned feature-tile axis: second parallel axis for v7x ----
    d_tile = math.gcd(D, 512) if (D % 128 == 0 and D > 512) else D
    # TODO(synk): if production D < 128, group same-length batches along the
    # feature axis so output stores stay lane-dense (avoids vst.msk penalty).

    per_bd = lambda b, j, ids: (b, 0, j)

    out = pl.pallas_call(
        _self_fusion_kernel,
        out_shape=jax.ShapeDtypeStruct((B, S, D), x.dtype),
        grid_spec=pltpu.PrefetchScalarGridSpec(
            num_scalar_prefetch=1,
            grid=(B, D // d_tile),
            in_specs=[
                pl.BlockSpec((None, S, d_tile), per_bd),                         # x
                pl.BlockSpec((None, 2 * S, S), lambda b, j, ids: (ids[b], 0, 0)),  # twiddles
                pl.BlockSpec((None, 1, d_tile), per_bd),                         # (1+W)/len
                pl.BlockSpec((None, 1, d_tile), per_bd),                         # b/len
            ],
            out_specs=pl.BlockSpec((None, S, d_tile), per_bd),
        ),
        compiler_params=pltpu.CompilerParams(
            dimension_semantics=("parallel", "parallel"),   # shard across v7x's 2 TCs
            vmem_limit_bytes=_vmem_limit_bytes(),
        ),
    )(table_ids, x, tables, scale_n, bias_n)
    return out


def _reference(x, len_x, params):
    """Pure-JAX re-implementation of the torch forward (uses real FFT/IFFT)."""
    ww1, bw1, ww2, bw2, wb1, bb1, wb2, bb2 = params
    hp = jax.lax.Precision.HIGHEST
    c = jnp.sum(x, axis=1) / len_x.astype(x.dtype)[:, None]

    def mlp(v, w1, b1, w2, b2):
        h = jax.nn.gelu(jnp.dot(v, w1, precision=hp) + b1, approximate=False)
        return jnp.dot(h, w2, precision=hp) + b2

    W = mlp(c, ww1, bw1, ww2, bw2)
    bb = mlp(c, wb1, bb1, wb2, bb2)

    B, S, D = x.shape
    out = jnp.zeros((B, S, D), jnp.float32)
    for i in range(B):
        li = int(len_x[i])
        xf = jnp.fft.fft(x[i, :li, :], axis=0)
        filt = xf * (1.0 + W[i])[None, :] + bb[i][None, :]
        # modReLU (|z|*exp(i*angle(z)) where |z|>0, else 0) is the identity.
        rec = jnp.real(jnp.fft.ifft(filt, axis=0))
        out = out.at[i, :li, :].set(rec.astype(jnp.float32))
    return out


if __name__ == "__main__":
    B, S, D, H = 2, 8, 32, 40            # batch, seq, dim, hid_dim (module default 40)
    key = jax.random.PRNGKey(0)
    ks = jax.random.split(key, 9)

    x = jax.random.normal(ks[0], (B, S, D), dtype=jnp.float32)
    len_x = jnp.array([8, 5], dtype=jnp.int32)   # one full, one ragged sequence

    def xavier(k, fan_in, fan_out):
        std = math.sqrt(2.0 / (fan_in + fan_out))
        return std * jax.random.normal(k, (fan_in, fan_out), dtype=jnp.float32)

    ww1 = xavier(ks[1], D, H)
    bw1 = 0.1 * jax.random.normal(ks[2], (H,), dtype=jnp.float32)
    ww2 = xavier(ks[3], H, D)
    bw2 = 0.1 * jax.random.normal(ks[4], (D,), dtype=jnp.float32)
    wb1 = xavier(ks[5], D, H)
    bb1 = 0.1 * jax.random.normal(ks[6], (H,), dtype=jnp.float32)
    wb2 = xavier(ks[7], H, D)
    bb2 = 0.1 * jax.random.normal(ks[8], (D,), dtype=jnp.float32)
    params = (ww1, bw1, ww2, bw2, wb1, bb1, wb2, bb2)

    out = jax.block_until_ready(self_fusion(x, len_x, params))
    ref = jax.block_until_ready(_reference(x, len_x, params))

    assert out.shape == ref.shape
    assert bool(jnp.all(jnp.isfinite(out)))
    # Tolerance covers the bf16 MXU operands of the masked DFT/IDFT (per-element
    # rounding ~2^-9, error grows ~sqrt(len)); everything else is exact f32.
    assert jnp.allclose(out, ref, atol=2e-2, rtol=2e-2), (
        f"mismatch vs reference, max abs err {float(jnp.max(jnp.abs(out - ref)))}")
    print("KERNEL_OK")
</pallas_src>

<mosaic_0001>
module attributes {stable_mosaic.version = 11 : i64} {
  func.func @_self_fusion_kernel(%arg0: i32, %arg1: i32, %arg2: memref<2xi32, #tpu.memory_space<smem>>, %arg3: memref<1x8x32xf32, #tpu.memory_space<vmem>>, %arg4: memref<1x16x8xbf16, #tpu.memory_space<vmem>>, %arg5: memref<1x1x32xf32, #tpu.memory_space<vmem>>, %arg6: memref<1x1x32xf32, #tpu.memory_space<vmem>>, %arg7: memref<1x8x32xf32, #tpu.memory_space<vmem>>) attributes {dimension_semantics = [#tpu.dimension_semantics<parallel>, #tpu.dimension_semantics<parallel>], iteration_bounds = array<i64: 2, 1>, scalar_prefetch = 1 : i64, scratch_operands = 0 : i64, tpu.core_type = #tpu.core_type<tc>, window_params = [{transform_indices = @transform_0, window_bounds = array<i64: 1, 8, 32>}, {transform_indices = @transform_1, window_bounds = array<i64: 1, 16, 8>}, {transform_indices = @transform_2, window_bounds = array<i64: 1, 1, 32>}, {transform_indices = @transform_3, window_bounds = array<i64: 1, 1, 32>}, {transform_indices = @transform_4, window_bounds = array<i64: 1, 8, 32>}]} {
    %c0 = arith.constant 0 : index
    %c0_0 = arith.constant 0 : index
    %c0_1 = arith.constant 0 : index
    %0 = vector.load %arg4[%c0, %c0_0, %c0_1] : memref<1x16x8xbf16, #tpu.memory_space<vmem>>, vector<1x16x8xbf16>
    %1 = vector.shape_cast %0 : vector<1x16x8xbf16> to vector<16x8xbf16>
    %c0_2 = arith.constant 0 : index
    %c0_3 = arith.constant 0 : index
    %c0_4 = arith.constant 0 : index
    %2 = vector.load %arg3[%c0_2, %c0_3, %c0_4] : memref<1x8x32xf32, #tpu.memory_space<vmem>>, vector<1x8x32xf32>
    %3 = vector.shape_cast %2 : vector<1x8x32xf32> to vector<8x32xf32>
    %4 = arith.truncf %3 : vector<8x32xf32> to vector<8x32xbf16>
    %cst = arith.constant dense<0.000000e+00> : vector<16x32xf32>
    %5 = tpu.matmul %1, %4, %cst {dimension_numbers = #tpu.dot_dimension_numbers<[1], [0], [0], [1], [0, 0, 1, 1], [], []>} : vector<16x8xbf16>, vector<8x32xbf16>, vector<16x32xf32> -> vector<16x32xf32>
    %c0_5 = arith.constant 0 : index
    %c0_6 = arith.constant 0 : index
    %c0_7 = arith.constant 0 : index
    %6 = vector.load %arg5[%c0_5, %c0_6, %c0_7] : memref<1x1x32xf32, #tpu.memory_space<vmem>>, vector<1x1x32xf32>
    %7 = vector.shape_cast %6 : vector<1x1x32xf32> to vector<1x32xf32>
    %c0_8 = arith.constant 0 : index
    %c0_9 = arith.constant 0 : index
    %c0_10 = arith.constant 0 : index
    %8 = vector.load %arg6[%c0_8, %c0_9, %c0_10] : memref<1x1x32xf32, #tpu.memory_space<vmem>>, vector<1x1x32xf32>
    %9 = vector.shape_cast %8 : vector<1x1x32xf32> to vector<1x32xf32>
    %10 = vector.extract_strided_slice %5 {offsets = [0, 0], sizes = [8, 32], strides = [1, 1]} : vector<16x32xf32> to vector<8x32xf32>
    %11 = vector.broadcast %7 : vector<1x32xf32> to vector<8x32xf32>
    %12 = arith.mulf %10, %11 : vector<8x32xf32>
    %13 = vector.broadcast %9 : vector<1x32xf32> to vector<8x32xf32>
    %14 = arith.addf %12, %13 : vector<8x32xf32>
    %15 = arith.truncf %14 : vector<8x32xf32> to vector<8x32xbf16>
    %16 = vector.extract_strided_slice %5 {offsets = [8, 0], sizes = [8, 32], strides = [1, 1]} : vector<16x32xf32> to vector<8x32xf32>
    %17 = vector.broadcast %7 : vector<1x32xf32> to vector<8x32xf32>
    %18 = arith.mulf %16, %17 : vector<8x32xf32>
    %19 = arith.truncf %18 : vector<8x32xf32> to vector<8x32xbf16>
    %20 = vector.extract_strided_slice %1 {offsets = [0, 0], sizes = [8, 8], strides = [1, 1]} : vector<16x8xbf16> to vector<8x8xbf16>
    %cst_11 = arith.constant dense<0.000000e+00> : vector<8x32xf32>
    %21 = tpu.matmul %20, %15, %cst_11 {dimension_numbers = #tpu.dot_dimension_numbers<[1], [0], [0], [1], [0, 0, 1, 1], [], []>} : vector<8x8xbf16>, vector<8x32xbf16>, vector<8x32xf32> -> vector<8x32xf32>
    %22 = vector.extract_strided_slice %1 {offsets = [8, 0], sizes = [8, 8], strides = [1, 1]} : vector<16x8xbf16> to vector<8x8xbf16>
    %cst_12 = arith.constant dense<0.000000e+00> : vector<8x32xf32>
    %23 = tpu.matmul %22, %19, %cst_12 {dimension_numbers = #tpu.dot_dimension_numbers<[1], [0], [0], [1], [0, 0, 1, 1], [], []>} : vector<8x8xbf16>, vector<8x32xbf16>, vector<8x32xf32> -> vector<8x32xf32>
    %24 = arith.addf %21, %23 : vector<8x32xf32>
    %c0_13 = arith.constant 0 : index
    %c0_14 = arith.constant 0 : index
    %c0_15 = arith.constant 0 : index
    %25 = vector.load %arg7[%c0_13, %c0_14, %c0_15] : memref<1x8x32xf32, #tpu.memory_space<vmem>>, vector<1x8x32xf32>
    %26 = vector.shape_cast %25 : vector<1x8x32xf32> to vector<8x32xf32>
    %27 = vector.shape_cast %24 : vector<8x32xf32> to vector<1x8x32xf32>
    tpu.vector_store %arg7[%c0_13, %c0_14, %c0_15], %27 {strides = array<i32>} : memref<1x8x32xf32, #tpu.memory_space<vmem>>, vector<1x8x32xf32>,
    return
  }
  func.func @transform_0(%arg0: i32, %arg1: i32, %arg2: memref<2xi32, #tpu.memory_space<smem>>) -> (i32, i32, i32) {
    %c0_i32 = arith.constant 0 : i32
    %c0_i32_0 = arith.constant 0 : i32
    return %arg0, %c0_i32, %arg1 : i32, i32, i32
  }
  func.func @transform_1(%arg0: i32, %arg1: i32, %arg2: memref<2xi32, #tpu.memory_space<smem>>) -> (i32, i32, i32) {
    %0 = arith.index_cast %arg0 : i32 to index
    %1 = memref.load %arg2[%0] : memref<2xi32, #tpu.memory_space<smem>>
    %c0_i32 = arith.constant 0 : i32
    %c0_i32_0 = arith.constant 0 : i32
    %c0_i32_1 = arith.constant 0 : i32
    return %1, %c0_i32, %c0_i32_0 : i32, i32, i32
  }
  func.func @transform_2(%arg0: i32, %arg1: i32, %arg2: memref<2xi32, #tpu.memory_space<smem>>) -> (i32, i32, i32) {
    %c0_i32 = arith.constant 0 : i32
    %c0_i32_0 = arith.constant 0 : i32
    return %arg0, %c0_i32, %arg1 : i32, i32, i32
  }
  func.func @transform_3(%arg0: i32, %arg1: i32, %arg2: memref<2xi32, #tpu.memory_space<smem>>) -> (i32, i32, i32) {
    %c0_i32 = arith.constant 0 : i32
    %c0_i32_0 = arith.constant 0 : i32
    return %arg0, %c0_i32, %arg1 : i32, i32, i32
  }
  func.func @transform_4(%arg0: i32, %arg1: i32, %arg2: memref<2xi32, #tpu.memory_space<smem>>) -> (i32, i32, i32) {
    %c0_i32 = arith.constant 0 : i32
    %c0_i32_0 = arith.constant 0 : i32
    return %arg0, %c0_i32, %arg1 : i32, i32, i32
  }
}

</mosaic_0001>

<llo_original>
// kernel: tpu_custom_call.1
$region0: #{tpu_custom_call.1}
  #allocation0 [shape = 'u32[]', space=smem, size = 0x4, offset = 0x4, fixed_abs, tag = 'smem constant byte address 0x4 - core index']
  #allocation1 [shape = 'u32[144,128]{1,0:T(1,128)}', space=vmem, size = 0x12000, scoped, tag = 'internal scratch']
  #allocation2 [shape = 's32[1]{0}', space=sflag, size = 0x4, scoped, tag = 'scoped memory for tpu_custom_call.1']
  #allocation3 [shape = 'u8[512]{0}', space=smem, size = 0x200, scoped, tag = 'prefetched SMEM operand 0']
  %s0 = inlined_call_operand.vmem [shape: s32[2], index: 0, kind: input, shape index: {}]
  %s1 = inlined_call_operand.vmem [shape: f32[2,8,32], index: 1, kind: input, shape index: {}]
  %s2 = inlined_call_operand.vmem [shape: bf16[2,16,8], index: 2, kind: input, shape index: {}]
  %s3 = inlined_call_operand.vmem [shape: f32[2,1,32], index: 3, kind: input, shape index: {}]
  %s4 = inlined_call_operand.vmem [shape: f32[2,1,32], index: 4, kind: input, shape index: {}]
  %s5 = inlined_call_operand.hbm [shape: f32[2,8,32], index: 5, kind: output, shape index: {}]
  %s6 = sld [smem:[#allocation0]]
  $region49: #{tpu_custom_call.1} parent=0
    _
  %s8 = ssub.s32 1, %s6
  %s9 = scalar_select 0, %s8, %s6
  %s10 = sshll.u32 %s0, 4
  %s11 = int_to_ptr.vmem [resolvable:$true] %s10
  %13 = dma.vmem_to_smem %s11, 16, [#allocation3], [#allocation2]
  %14 = dma.done [#allocation2], 16
  %15 = sfence
  $region1: #{tpu_custom_call.1} parent=0
    #allocation4 [shape = 'u8[8192]{0}', space=vmem, size = 0x2000, scoped, tag = 'output window, operand 0']
    #allocation5 [shape = 's32[2]{0}', space=sflag, size = 0x8, scoped, tag = 'scoped memory for tpu_custom_call.1']
    %16 = vsyncpa [#allocation5], 0
    %s17 = scalar_lea.sflag [#allocation5], 1
    %18 = vsyncpa %s17, 0
    loop: start=0, step=1, limit=4
    $region2: #{tpu_custom_call.1} parent=1 // loop_pre_header
      _
    $region3: #{tpu_custom_call.1} parent=1 // loop_header
      %s20 = sphi 0, %s24
      %p21 = scmp.ge.s32.totalorder %s20, 4
      %s27 = sphi 0, %s39
      %s28 = sphi 0, %s35
      %s29 = sphi 0, %s27
      %s30 = sphi 0, %s28
      %s31 = sphi 0, %s29
      %s32 = sphi 0, %s30
      %s44 = sphi 0, %s46
      %s47 = sphi 0, %s44
      %s48 = sphi 0, %s47
      %s64 = sphi 0, %s48
      %s72 = sphi 0, %s74
      %s75 = sphi 0, %s72
      %s76 = sphi 0, %s75
      %s92 = sphi 0, %s76
      %s100 = sphi 0, %s102
      %s103 = sphi 0, %s100
      %s104 = sphi 0, %s103
      %s120 = sphi 0, %s104
      %s128 = sphi 0, %s130
      %s131 = sphi 0, %s128
      %s132 = sphi 0, %s131
      %s148 = sphi 0, %s132
      %s156 = sphi 0, %s158
      %s159 = sphi 0, %s156
      %s160 = sphi 0, %s159
      %s176 = sphi 0, %s160
    $region4: #{tpu_custom_call.1} parent=1 // loop_header_branch
      %23 = sbr.rel (%p21) target = $region8
    $region5: #{tpu_custom_call.1} parent=1 // loop_body
      %s25 = ssub.s32 %s20, 1
      %s26 = ssub.s32 %s20, 2
      %s33 = sadd.s32 1, %s28
      %p34 = scmp.ge.s32.totalorder %s33, 1
      %s35 = scalar_select %p34, 0, %s33
      %s36 = sadd.s32 1, %s27
      %s37 = scalar_select %p34, %s36, %s27
      %p38 = scmp.ge.s32.totalorder %s37, 2
      %s39 = scalar_select %p38, 0, %s37
      %s40 = ssub.s32 %s27, %s39
      %s41 = ssub.s32 %s28, %s35
      %s42 = sor.u32 %s40, %s41
      %p43 = scmp.eq.s32.totalorder %s42, 0
      %s45 = sadd.s32 %s44, 1
      %s46 = scalar_select %p43, %s44, %s45
      %p49 = pneg %p43
      %p50 = scmp.eq.s32.totalorder %s20, 1
      %p51 = por %p49, %p50
      %p52 = scmp.ne.s32.totalorder %s44, %s47
      %p53 = scmp.eq.s32.totalorder %s20, 0
      %p54 = por %p52, %p53
      %p55 = scmp.ne.s32.totalorder %s44, %s47
      %p56 = scmp.eq.s32.totalorder %s25, 1
      %p57 = por %p55, %p56
      %p58 = scmp.ne.s32.totalorder %s47, %s48
      %p59 = scmp.eq.s32.totalorder %s25, 0
      %p60 = por %p58, %p59
      %p61 = scmp.ne.s32.totalorder %s47, %s48
      %p62 = scmp.eq.s32.totalorder %s26, 1
      %p63 = por %p61, %p62
      %p65 = scmp.ne.s32.totalorder %s48, %s64
      %p66 = scmp.eq.s32.totalorder %s26, 0
      %p67 = por %p65, %p66
      %s68 = sld [smem:[#allocation3 + %s27]]
      %s69 = sld [smem:[#allocation3 + %s39]]
      %s70 = ssub.s32 %s68, %s69
      %p71 = scmp.eq.s32.totalorder %s70, 0
      %s73 = sadd.s32 %s72, 1
      %s74 = scalar_select %p71, %s72, %s73
      %p77 = pneg %p71
      %p78 = scmp.eq.s32.totalorder %s20, 1
      %p79 = por %p77, %p78
      %p80 = scmp.ne.s32.totalorder %s72, %s75
      %p81 = scmp.eq.s32.totalorder %s20, 0
      %p82 = por %p80, %p81
      %p83 = scmp.ne.s32.totalorder %s72, %s75
      %p84 = scmp.eq.s32.totalorder %s25, 1
      %p85 = por %p83, %p84
      %p86 = scmp.ne.s32.totalorder %s75, %s76
      %p87 = scmp.eq.s32.totalorder %s25, 0
      %p88 = por %p86, %p87
      %p89 = scmp.ne.s32.totalorder %s75, %s76
      %p90 = scmp.eq.s32.totalorder %s26, 1
      %p91 = por %p89, %p90
      %p93 = scmp.ne.s32.totalorder %s76, %s92
      %p94 = scmp.eq.s32.totalorder %s26, 0
      %p95 = por %p93, %p94
      %s96 = ssub.s32 %s27, %s39
      %s97 = ssub.s32 %s28, %s35
      %s98 = sor.u32 %s96, %s97
      %p99 = scmp.eq.s32.totalorder %s98, 0
      %s101 = sadd.s32 %s100, 1
      %s102 = scalar_select %p99, %s100, %s101
      %p105 = pneg %p99
      %p106 = scmp.eq.s32.totalorder %s20, 1
      %p107 = por %p105, %p106
      %p108 = scmp.ne.s32.totalorder %s100, %s103
      %p109 = scmp.eq.s32.totalorder %s20, 0
      %p110 = por %p108, %p109
      %p111 = scmp.ne.s32.totalorder %s100, %s103
      %p112 = scmp.eq.s32.totalorder %s25, 1
      %p113 = por %p111, %p112
      %p114 = scmp.ne.s32.totalorder %s103, %s104
      %p115 = scmp.eq.s32.totalorder %s25, 0
      %p116 = por %p114, %p115
      %p117 = scmp.ne.s32.totalorder %s103, %s104
      %p118 = scmp.eq.s32.totalorder %s26, 1
      %p119 = por %p117, %p118
      %p121 = scmp.ne.s32.totalorder %s104, %s120
      %p122 = scmp.eq.s32.totalorder %s26, 0
      %p123 = por %p121, %p122
      %s124 = ssub.s32 %s27, %s39
      %s125 = ssub.s32 %s28, %s35
      %s126 = sor.u32 %s124, %s125
      %p127 = scmp.eq.s32.totalorder %s126, 0
      %s129 = sadd.s32 %s128, 1
      %s130 = scalar_select %p127, %s128, %s129
      %p133 = pneg %p127
      %p134 = scmp.eq.s32.totalorder %s20, 1
      %p135 = por %p133, %p134
      %p136 = scmp.ne.s32.totalorder %s128, %s131
      %p137 = scmp.eq.s32.totalorder %s20, 0
      %p138 = por %p136, %p137
      %p139 = scmp.ne.s32.totalorder %s128, %s131
      %p140 = scmp.eq.s32.totalorder %s25, 1
      %p141 = por %p139, %p140
      %p142 = scmp.ne.s32.totalorder %s131, %s132
      %p143 = scmp.eq.s32.totalorder %s25, 0
      %p144 = por %p142, %p143
      %p145 = scmp.ne.s32.totalorder %s131, %s132
      %p146 = scmp.eq.s32.totalorder %s26, 1
      %p147 = por %p145, %p146
      %p149 = scmp.ne.s32.totalorder %s132, %s148
      %p150 = scmp.eq.s32.totalorder %s26, 0
      %p151 = por %p149, %p150
      %s152 = ssub.s32 %s27, %s39
      %s153 = ssub.s32 %s28, %s35
      %s154 = sor.u32 %s152, %s153
      %p155 = scmp.eq.s32.totalorder %s154, 0
      %s157 = sadd.s32 %s156, 1
      %s158 = scalar_select %p155, %s156, %s157
      %p161 = pneg %p155
      %p162 = scmp.eq.s32.totalorder %s20, 1
      %p163 = por %p161, %p162
      %p164 = scmp.ne.s32.totalorder %s156, %s159
      %p165 = scmp.eq.s32.totalorder %s20, 0
      %p166 = por %p164, %p165
      %p167 = scmp.ne.s32.totalorder %s156, %s159
      %p168 = scmp.eq.s32.totalorder %s25, 1
      %p169 = por %p167, %p168
      %p170 = scmp.ne.s32.totalorder %s159, %s160
      %p171 = scmp.eq.s32.totalorder %s25, 0
      %p172 = por %p170, %p171
      %p173 = scmp.ne.s32.totalorder %s159, %s160
      %p174 = scmp.eq.s32.totalorder %s26, 1
      %p175 = por %p173, %p174
      %p177 = scmp.ne.s32.totalorder %s160, %s176
      %p178 = scmp.eq.s32.totalorder %s26, 0
      %p179 = por %p177, %p178
      %p180 = scmp.le.s32.totalorder 1, %s20
      %p181 = scmp.lt.s32.totalorder %s20, 3
      %p182 = pnand %p180, %p181
      %p183 = pneg %p182
      // Predicated region
      $region9: #{tpu_custom_call.1} parent=5 // pred_check
        _
      $region10: #{tpu_custom_call.1} parent=5 // pred_check_branch
        %185 = sbr.rel (%p182) target = $region12
      $region11: #{tpu_custom_call.1} parent=5 // pred_region
        %s186 = ssub.s32 %s20, 1
      $region12: #{tpu_custom_call.1} parent=5 // pred_fallthru
        _
      %p187 = scmp.lt.s32.totalorder %s20, 2
      // Predicated region
      $region13: #{tpu_custom_call.1} parent=5 // pred_check
        %p188 = pneg %p187
      $region14: #{tpu_custom_call.1} parent=5 // pred_check_branch
        %190 = sbr.rel (%p188) target = $region16
      $region15: #{tpu_custom_call.1} parent=5 // pred_region
        // Predicated region
        $region17: #{tpu_custom_call.1} parent=15 // pred_check
          %p191 = pneg %p54
        $region18: #{tpu_custom_call.1} parent=15 // pred_check_branch
          %193 = sbr.rel (%p191) target = $region20
        $region19: #{tpu_custom_call.1} parent=15 // pred_region
          %p194 = scmp.lt.s32.totalorder %s27, 1
          %s195 = scalar_select %p194, %s27, 1
          %p196 = scmp.lt.s32.totalorder %s28, 0
          %s197 = scalar_select %p196, %s28, 0
          %s198 = sadd.s32 %s197, %s195
          %s199 = smul.addr %s198, 8
          %s200 = scalar_lea.vmem %s1, %s199
        $region20: #{tpu_custom_call.1} parent=15 // pred_fallthru
          _
        // Predicated region
        $region21: #{tpu_custom_call.1} parent=15 // pred_check
          %p201 = pneg %p82
        $region22: #{tpu_custom_call.1} parent=15 // pred_check_branch
          %203 = sbr.rel (%p201) target = $region24
        $region23: #{tpu_custom_call.1} parent=15 // pred_region
          %s204 = sld [smem:[#allocation3 + %s27]]
          %p205 = scmp.lt.s32.totalorder %s204, 1
          %s206 = scalar_select %p205, %s204, 1
          %s207 = smul.addr %s206, 2
          %s208 = smul.addr %s207, 4
          %s209 = scalar_lea.vmem %s2, %s208
          %s210 = sld [smem:[#allocation3 + %s27]]
        $region24: #{tpu_custom_call.1} parent=15 // pred_fallthru
          _
        // Predicated region
        $region25: #{tpu_custom_call.1} parent=15 // pred_check
          %p211 = pneg %p110
        $region26: #{tpu_custom_call.1} parent=15 // pred_check_branch
          %213 = sbr.rel (%p211) target = $region28
        $region27: #{tpu_custom_call.1} parent=15 // pred_region
          %p214 = scmp.lt.s32.totalorder %s27, 1
          %s215 = scalar_select %p214, %s27, 1
          %p216 = scmp.lt.s32.totalorder %s28, 0
          %s217 = scalar_select %p216, %s28, 0
          %s218 = sadd.s32 %s217, %s215
          %s219 = scalar_lea.vmem %s3, %s218
        $region28: #{tpu_custom_call.1} parent=15 // pred_fallthru
          _
        // Predicated region
        $region29: #{tpu_custom_call.1} parent=15 // pred_check
          %p220 = pneg %p138
        $region30: #{tpu_custom_call.1} parent=15 // pred_check_branch
          %222 = sbr.rel (%p220) target = $region32
        $region31: #{tpu_custom_call.1} parent=15 // pred_region
          %p223 = scmp.lt.s32.totalorder %s27, 1
          %s224 = scalar_select %p223, %s27, 1
          %p225 = scmp.lt.s32.totalorder %s28, 0
          %s226 = scalar_select %p225, %s28, 0
          %s227 = sadd.s32 %s226, %s224
          %s228 = scalar_lea.vmem %s4, %s227
        $region32: #{tpu_custom_call.1} parent=15 // pred_fallthru
          _
      $region16: #{tpu_custom_call.1} parent=5 // pred_fallthru
        _
      %p229 = scmp.le.s32.totalorder 1, %s20
      %p230 = scmp.lt.s32.totalorder %s20, 3
      %p231 = pnand %p229, %p230
      %p232 = pneg %p231
      // Predicated region
      $region33: #{tpu_custom_call.1} parent=5 // pred_check
        _
      $region34: #{tpu_custom_call.1} parent=5 // pred_check_branch
        %234 = sbr.rel (%p231) target = $region36
      $region35: #{tpu_custom_call.1} parent=5 // pred_region
        %s235 = ssub.s32 %s20, 1
        %p236 = scmp.lt.s32.totalorder %s29, 1
        %s237 = scalar_select %p236, %s29, 1
        %p238 = scmp.lt.s32.totalorder %s30, 0
        %s239 = scalar_select %p238, %s30, 0
        %s240 = sadd.s32 %s239, %s237
        %s241 = smul.addr %s240, 8
        %s242 = scalar_lea.vmem %s1, %s241
        %p243 = pneg %p60
        %p244 = pneg %p57
        %s245 = sld [smem:[#allocation3 + %s29]]
        %p246 = scmp.lt.s32.totalorder %s245, 1
        %s247 = scalar_select %p246, %s245, 1
        %s248 = smul.addr %s247, 2
        %s249 = smul.addr %s248, 4
        %s250 = scalar_lea.vmem %s2, %s249
        %p251 = pneg %p88
        %p252 = pneg %p85
        %p253 = scmp.lt.s32.totalorder %s29, 1
        %s254 = scalar_select %p253, %s29, 1
        %p255 = scmp.lt.s32.totalorder %s30, 0
        %s256 = scalar_select %p255, %s30, 0
        %s257 = sadd.s32 %s256, %s254
        %s258 = scalar_lea.vmem %s3, %s257
        %p259 = pneg %p116
        %p260 = pneg %p113
        %p261 = scmp.lt.s32.totalorder %s29, 1
        %s262 = scalar_select %p261, %s29, 1
        %p263 = scmp.lt.s32.totalorder %s30, 0
        %s264 = scalar_select %p263, %s30, 0
        %s265 = sadd.s32 %s264, %s262
        %s266 = scalar_lea.vmem %s4, %s265
        %p267 = pneg %p144
        %p268 = pneg %p141
        %p269 = pneg %p172
        %p270 = pneg %p169
        %s271 = sand.u32 %s159, 1
        %s272 = scalar_lea.sflag [#allocation5], %s271
        %s273 = sand.u32 %s159, 1
        %s274 = smul.addr %s273, 8
        %s275 = scalar_lea.vmem [#allocation4], %s274
        %p276 = scmp.lt.s32.totalorder %s29, 1
        %s277 = scalar_select %p276, %s29, 1
        %p278 = scmp.lt.s32.totalorder %s30, 0
        %s279 = scalar_select %p278, %s30, 0
        %s280 = sadd.s32 %s279, %s277
        %s281 = smul.addr %s280, 8
        %s282 = scalar_lea.vmem %s1, %s281
        %s283 = sld [smem:[#allocation3 + %s29]]
        %p284 = scmp.lt.s32.totalorder %s283, 1
        %s285 = scalar_select %p284, %s283, 1
        %s286 = smul.addr %s285, 2
        %s287 = smul.addr %s286, 4
        %s288 = scalar_lea.vmem %s2, %s287
        %s289 = sld [smem:[#allocation3 + %s29]]
        %p290 = scmp.lt.s32.totalorder %s29, 1
        %s291 = scalar_select %p290, %s29, 1
        %p292 = scmp.lt.s32.totalorder %s30, 0
        %s293 = scalar_select %p292, %s30, 0
        %s294 = sadd.s32 %s293, %s291
        %s295 = scalar_lea.vmem %s3, %s294
        %p296 = scmp.lt.s32.totalorder %s29, 1
        %s297 = scalar_select %p296, %s29, 1
        %p298 = scmp.lt.s32.totalorder %s30, 0
        %s299 = scalar_select %p298, %s30, 0
        %s300 = sadd.s32 %s299, %s297
        %s301 = scalar_lea.vmem %s4, %s300
        %v303 = vld [vmem:[%s288] sm:$0xf]
        %v304 = vld [vmem:[%s288 + $0x4] sm:$0xf]
        %v305 = vld [vmem:[%s282] sm:$0xff]
        %v306 = vpack.c.bf16 %v305, %v305
        %v309 = vunpack.c.l.b16 %v303
        %v310 = vunpack.c.l.b16 %v304
        %v311 = vpack.c.b16 %v310, %v309
        %vm312 = vcmask 64512
        %v314 = vsel %vm312, %v311, 0
        %vm316 = vcmask 1043456
        %v318 = vsel %vm316, %v306, 0
        %320 = vmatprep.subr.bf16.mxu0 0
        %321 = vmatpush1.bf16.msra.mxu0 0
        %322 = vmatprep.subr.bf16.mxu0 0
        %323 = vmatpush1.bf16.msra.mxu0 0
        %324 = vmatprep.subr.bf16.mxu0 0
        %325 = vmatpush1.bf16.msra.mxu0 0
        %326 = vmatprep.subr.bf16.mxu0 0
        %327 = vmatpush1.bf16.msra.mxu0 0
        %328 = vmatprep.subr.bf16.mxu0 0
        %329 = vmatpush1.bf16.msra.mxu0 0
        %330 = vmatprep.subr.bf16.mxu0 0
        %331 = vmatpush1.bf16.msra.mxu0 0
        %332 = vmatprep.subr.bf16.mxu0 0
        %333 = vmatpush1.bf16.msra.mxu0 0
        %334 = vmatprep.subr.bf16.mxu0 0
        %335 = vmatpush1.bf16.msra.mxu0 %v318
        %336 = vmatprep.subr.bf16.mxu0 0
        %337 = vmatpush2.bf16.msra.mxu0 0
        %338 = vmatprep.subr.bf16.mxu0 0
        %339 = vmatpush2.bf16.msra.mxu0 0
        %340 = vmatprep.subr.bf16.mxu0 0
        %341 = vmatpush2.bf16.msra.mxu0 0
        %342 = vmatprep.subr.bf16.mxu0 0
        %343 = vmatpush2.bf16.msra.mxu0 0
        %344 = vmatprep.subr.bf16.mxu0 0
        %345 = vmatpush2.bf16.msra.mxu0 0
        %346 = vmatprep.subr.bf16.mxu0 0
        %347 = vmatpush2.bf16.msra.mxu0 0
        %348 = vmatprep.subr.bf16.mxu0 0
        %349 = vmatpush2.bf16.msra.mxu0 0
        %350 = vmatprep.subr.bf16.mxu0 0
        %351 = vmatpush2.bf16.msra.mxu0 0
        %352 = vmatprep.mubr.bf16.mxu0 0
        %353 = vmatmul.mubr.bf16.gmra.mxu0 %v314
        %v354 = vpop.f32.mrf.mxu0
        %v355 = vadd.f32 0.0, %v354
        %v356 = vpop.f32.mrf.mxu0
        %v357 = vpop.f32.mrf.mxu0
        %v358 = vadd.f32 0.0, %v357
        %v359 = vpop.f32.mrf.mxu0
        %360 = vdwg.mxu0
        %v361 = vld [vmem:[%s295] sm:$0x1]
        %v362 = vld [vmem:[%s301] sm:$0x1]
        %v364 = vlaneseq
        %v365 = vshrl.u32 %v364, 7
        %v366 = vsub.s32 0, %v365
        %v367 = vrot.slane %v361, %v366
        %v369 = vmul.f32 %v355, %v367
        %v371 = vlaneseq
        %v372 = vshrl.u32 %v371, 7
        %v373 = vsub.s32 0, %v372
        %v374 = vrot.slane %v362, %v373
        %v376 = vadd.f32 %v369, %v374
        %v377 = vpack.c.bf16 %v376, %v376
        %v378 = vmul.f32 %v358, %v367
        %v379 = vpack.c.bf16 %v378, %v378
        %v381 = vsel %vm312, %v304, 0
        %v384 = vsel %vm316, %v379, 0
        %386 = vmatprep.subr.bf16.mxu0 0
        %387 = vmatpush1.bf16.msra.mxu0 0
        %388 = vmatprep.subr.bf16.mxu0 0
        %389 = vmatpush1.bf16.msra.mxu0 0
        %390 = vmatprep.subr.bf16.mxu0 0
        %391 = vmatpush1.bf16.msra.mxu0 0
        %392 = vmatprep.subr.bf16.mxu0 0
        %393 = vmatpush1.bf16.msra.mxu0 0
        %394 = vmatprep.subr.bf16.mxu0 0
        %395 = vmatpush1.bf16.msra.mxu0 0
        %396 = vmatprep.subr.bf16.mxu0 0
        %397 = vmatpush1.bf16.msra.mxu0 0
        %398 = vmatprep.subr.bf16.mxu0 0
        %399 = vmatpush1.bf16.msra.mxu0 0
        %400 = vmatprep.subr.bf16.mxu0 0
        %401 = vmatpush1.bf16.msra.mxu0 %v384
        %402 = vmatprep.subr.bf16.mxu0 0
        %403 = vmatpush2.bf16.msra.mxu0 0
        %404 = vmatprep.subr.bf16.mxu0 0
        %405 = vmatpush2.bf16.msra.mxu0 0
        %406 = vmatprep.subr.bf16.mxu0 0
        %407 = vmatpush2.bf16.msra.mxu0 0
        %408 = vmatprep.subr.bf16.mxu0 0
        %409 = vmatpush2.bf16.msra.mxu0 0
        %410 = vmatprep.subr.bf16.mxu0 0
        %411 = vmatpush2.bf16.msra.mxu0 0
        %412 = vmatprep.subr.bf16.mxu0 0
        %413 = vmatpush2.bf16.msra.mxu0 0
        %414 = vmatprep.subr.bf16.mxu0 0
        %415 = vmatpush2.bf16.msra.mxu0 0
        %416 = vmatprep.subr.bf16.mxu0 0
        %417 = vmatpush2.bf16.msra.mxu0 0
        %418 = vmatprep.mubr.bf16.mxu0 0
        %419 = vmatmul.mubr.bf16.gmra.mxu0 %v381
        %v420 = vpop.f32.mrf.mxu0
        %v421 = vadd.f32 0.0, %v420
        %v422 = vpop.f32.mrf.mxu0
        %v423 = vpop.f32.mrf.mxu0
        %v424 = vpop.f32.mrf.mxu0
        %425 = vdwg.mxu0
        %v427 = vsel %vm312, %v303, 0
        %v430 = vsel %vm316, %v377, 0
        %432 = vmatprep.subr.bf16.mxu0 0
        %433 = vmatpush1.bf16.msra.mxu0 0
        %434 = vmatprep.subr.bf16.mxu0 0
        %435 = vmatpush1.bf16.msra.mxu0 0
        %436 = vmatprep.subr.bf16.mxu0 0
        %437 = vmatpush1.bf16.msra.mxu0 0
        %438 = vmatprep.subr.bf16.mxu0 0
        %439 = vmatpush1.bf16.msra.mxu0 0
        %440 = vmatprep.subr.bf16.mxu0 0
        %441 = vmatpush1.bf16.msra.mxu0 0
        %442 = vmatprep.subr.bf16.mxu0 0
        %443 = vmatpush1.bf16.msra.mxu0 0
        %444 = vmatprep.subr.bf16.mxu0 0
        %445 = vmatpush1.bf16.msra.mxu0 0
        %446 = vmatprep.subr.bf16.mxu0 0
        %447 = vmatpush1.bf16.msra.mxu0 %v430
        %448 = vmatprep.subr.bf16.mxu0 0
        %449 = vmatpush2.bf16.msra.mxu0 0
        %450 = vmatprep.subr.bf16.mxu0 0
        %451 = vmatpush2.bf16.msra.mxu0 0
        %452 = vmatprep.subr.bf16.mxu0 0
        %453 = vmatpush2.bf16.msra.mxu0 0
        %454 = vmatprep.subr.bf16.mxu0 0
        %455 = vmatpush2.bf16.msra.mxu0 0
        %456 = vmatprep.subr.bf16.mxu0 0
        %457 = vmatpush2.bf16.msra.mxu0 0
        %458 = vmatprep.subr.bf16.mxu0 0
        %459 = vmatpush2.bf16.msra.mxu0 0
        %460 = vmatprep.subr.bf16.mxu0 0
        %461 = vmatpush2.bf16.msra.mxu0 0
        %462 = vmatprep.subr.bf16.mxu0 0
        %463 = vmatpush2.bf16.msra.mxu0 0
        %464 = vmatprep.mubr.bf16.mxu0 0
        %465 = vmatmul.mubr.bf16.gmra.mxu0 %v427
        %v466 = vpop.f32.mrf.mxu0
        %v467 = vadd.f32 %v421, %v466
        %v468 = vpop.f32.mrf.mxu0
        %v469 = vpop.f32.mrf.mxu0
        %v470 = vpop.f32.mrf.mxu0
        %471 = vdwg.mxu0
        %vm472 = vcmask 261120
        %473 = vst.msk [vmem:[%s275] sm:$0xff] %vm472, %v467
        %s474 = sand.u32 %s159, 1
        %s475 = scalar_lea.sflag [#allocation5], %s474
        %s476 = sand.u32 %s159, 1
        %s477 = smul.addr %s476, 8
        %s478 = scalar_lea.vmem [#allocation4], %s477
        // Predicated region
        $region37: #{tpu_custom_call.1} parent=35 // pred_check
          %p479 = pneg %p169
        $region38: #{tpu_custom_call.1} parent=35 // pred_check_branch
          %481 = sbr.rel (%p479) target = $region40
        $region39: #{tpu_custom_call.1} parent=35 // pred_region
          %s483 = ssub.s32 128, 128
          %484 = vsyncadd %s475, %s483
          %s485 = sadd.s32 %s30, %s29
          %s486 = smul.addr %s485, 128
          %s487 = scalar_lea.hbm %s5, %s486
          %s489 = sshll.u32 %s478, 4
          %s490 = int_to_ptr.vmem [resolvable:$true] %s489
          %492 = dma.vmem_to_hbm [thread:$0]  %s490, 128, %s487, %s475
        $region40: #{tpu_custom_call.1} parent=35 // pred_fallthru
          _
      $region36: #{tpu_custom_call.1} parent=5 // pred_fallthru
        _
      %p493 = scmp.le.s32.totalorder 2, %s20
      // Predicated region
      $region41: #{tpu_custom_call.1} parent=5 // pred_check
        %p494 = pneg %p493
      $region42: #{tpu_custom_call.1} parent=5 // pred_check_branch
        %496 = sbr.rel (%p494) target = $region44
      $region43: #{tpu_custom_call.1} parent=5 // pred_region
        %s497 = ssub.s32 %s20, 2
        // Predicated region
        $region45: #{tpu_custom_call.1} parent=43 // pred_check
          %p498 = pneg %p175
        $region46: #{tpu_custom_call.1} parent=43 // pred_check_branch
          %500 = sbr.rel (%p498) target = $region48
        $region47: #{tpu_custom_call.1} parent=43 // pred_region
          %s501 = sand.u32 %s160, 1
          %s502 = scalar_lea.sflag [#allocation5], %s501
          %s503 = sand.u32 %s160, 1
          %s504 = smul.addr %s503, 8
          %s505 = scalar_lea.vmem [#allocation4], %s504
          %506 = dma.done %s502, 128
        $region48: #{tpu_custom_call.1} parent=43 // pred_fallthru
          _
      $region44: #{tpu_custom_call.1} parent=5 // pred_fallthru
        _
    $region6: #{tpu_custom_call.1} parent=1 // loop_footer
      %s24 = sadd.s32 1, %s20
    $region7: #{tpu_custom_call.1} parent=1 // loop_footer_branch
      %19 = sbr.rel target = $region3
    $region8: #{tpu_custom_call.1} parent=1 // loop_exit
      _
    %507 = vsyncpa [#allocation5], 1
    %s508 = scalar_lea.sflag [#allocation5], 1
    %509 = vsyncpa %s508, 1

</llo_original>
